<compile_context>
chip_gen: v7x
topology: tpu7x:2x2x1
jax: 0.10.0
libtpu: 0.0.40
codegen_flags: <defaults>
</compile_context>

<pallas_src>
import jax
import jax.numpy as jnp
from jax.experimental import pallas as pl
from jax.experimental.pallas import tpu as pltpu

_LANES = 128
_MAX_BLOCK_ROWS = 2048  # 2048*128 f32 = 1 MiB per feature slab per block


def _linear_kernel(x_ref, w_ref, b_ref, o_ref):
    # x_ref: (2, Rb, 128) in VMEM — batch tiled as dense (Rb, 128) slabs.
    # w_ref: (2,) in SMEM, b_ref: (1,) in SMEM — scalar reads.
    # o_ref: (Rb, 128) in VMEM.
    x0 = x_ref[0]               # (Rb, 128)
    x1 = x_ref[1]               # (Rb, 128)
    w0 = w_ref[0]               # scalar
    w1 = w_ref[1]               # scalar
    b = b_ref[0]                # scalar
    # Pure VPU multiply-add; scalars broadcast against the dense (Rb,128) vregs.
    o_ref[...] = x0 * w0 + x1 * w1 + b


def lrm_forward(x, weight, bias):
    """y = x @ weight.T + bias, matching torch.nn.Linear(2, 1) semantics.

    x:      (N, 2) float32
    weight: (1, 2) float32  (PyTorch convention: (out_features, in_features))
    bias:   (1,)   float32
    """
    n, in_f = x.shape
    out_f = weight.shape[0]
    assert in_f == 2 and out_f == 1, "kernel specialized for Linear(2, 1)"

    # Map the batch onto (rows, 128 lanes). Block rows must be a multiple of 8
    # for full sublane occupancy; cap block size for VMEM / pipelining.
    rows = pl.cdiv(n, _LANES)
    block_rows = min(_MAX_BLOCK_ROWS, ((rows + 7) // 8) * 8)
    rows_pad = ((rows + block_rows - 1) // block_rows) * block_rows
    n_pad = rows_pad * _LANES

    # Feature-major, lane-dense layout: (2, rows_pad, 128).
    # TODO(synk): in a real model, produce x feature-major upstream (or fuse
    # this op) so the transpose+pad pass over HBM disappears.
    xt = jnp.pad(x.astype(jnp.float32).T, ((0, 0), (0, n_pad - n)))
    xt = xt.reshape(in_f, rows_pad, _LANES)

    w_flat = weight.reshape(-1).astype(jnp.float32)   # (2,)  -> SMEM
    b_flat = bias.reshape(-1).astype(jnp.float32)     # (1,)  -> SMEM

    grid = (rows_pad // block_rows,)

    y = pl.pallas_call(
        _linear_kernel,
        out_shape=jax.ShapeDtypeStruct((rows_pad, _LANES), jnp.float32),
        grid=grid,
        in_specs=[
            pl.BlockSpec((in_f, block_rows, _LANES), lambda i: (0, i, 0)),
            pl.BlockSpec(memory_space=pltpu.SMEM),              # weight scalars
            pl.BlockSpec(memory_space=pltpu.SMEM),              # bias scalar
        ],
        out_specs=pl.BlockSpec((block_rows, _LANES), lambda i: (i, 0)),
        compiler_params=pltpu.CompilerParams(
            dimension_semantics=("parallel",)),
    )(xt, w_flat, b_flat)

    # Drop the padding and restore (N, out_features).
    return y.reshape(-1)[:n, None].astype(x.dtype)


if __name__ == "__main__":
    key = jax.random.PRNGKey(0)
    kx, kw, kb = jax.random.split(key, 3)

    N, IN_F, OUT_F = 100, 2, 1

    # Deterministic synthetic parameters (same shapes as nn.Linear(2, 1)).
    bound = 1.0 / jnp.sqrt(jnp.float32(IN_F))
    weight = jax.random.uniform(kw, (OUT_F, IN_F), jnp.float32, -bound, bound)
    bias = jax.random.uniform(kb, (OUT_F,), jnp.float32, -bound, bound)

    x = jax.random.normal(kx, (N, IN_F), jnp.float32)

    y = lrm_forward(x, weight, bias)
    jax.block_until_ready(y)

    # Sanity check against plain JAX reference.
    y_ref = x @ weight.T + bias
    assert y.shape == (N, OUT_F)
    assert jnp.allclose(y, y_ref, atol=1e-5, rtol=1e-5)

    print("KERNEL_OK")
</pallas_src>

<mosaic_0001>
module attributes {stable_mosaic.version = 11 : i64} {
  func.func @_linear_kernel(%arg0: i32, %arg1: memref<2x8x128xf32, #tpu.memory_space<vmem>>, %arg2: memref<2xf32, #tpu.memory_space<smem>>, %arg3: memref<1xf32, #tpu.memory_space<smem>>, %arg4: memref<8x128xf32, #tpu.memory_space<vmem>>) attributes {dimension_semantics = [#tpu.dimension_semantics<parallel>], iteration_bounds = array<i64: 1>, scalar_prefetch = 0 : i64, scratch_operands = 0 : i64, tpu.core_type = #tpu.core_type<tc>, window_params = [{transform_indices = @transform_0, window_bounds = array<i64: 2, 8, 128>}, {transform_indices = @transform_1, window_bounds = array<i64: 2>}, {transform_indices = @transform_2, window_bounds = array<i64: 1>}, {transform_indices = @transform_3, window_bounds = array<i64: 8, 128>}]} {
    %c0 = arith.constant 0 : index
    %c0_0 = arith.constant 0 : index
    %c0_1 = arith.constant 0 : index
    %0 = vector.load %arg1[%c0, %c0_0, %c0_1] : memref<2x8x128xf32, #tpu.memory_space<vmem>>, vector<1x8x128xf32>
    %1 = vector.shape_cast %0 : vector<1x8x128xf32> to vector<8x128xf32>
    %c1 = arith.constant 1 : index
    %c0_2 = arith.constant 0 : index
    %c0_3 = arith.constant 0 : index
    %2 = vector.load %arg1[%c1, %c0_2, %c0_3] : memref<2x8x128xf32, #tpu.memory_space<vmem>>, vector<1x8x128xf32>
    %3 = vector.shape_cast %2 : vector<1x8x128xf32> to vector<8x128xf32>
    %c0_4 = arith.constant 0 : index
    %4 = memref.load %arg2[%c0_4] : memref<2xf32, #tpu.memory_space<smem>>
    %c1_5 = arith.constant 1 : index
    %5 = memref.load %arg2[%c1_5] : memref<2xf32, #tpu.memory_space<smem>>
    %c0_6 = arith.constant 0 : index
    %6 = memref.load %arg3[%c0_6] : memref<1xf32, #tpu.memory_space<smem>>
    %7 = vector.broadcast %4 : f32 to vector<8x128xf32>
    %8 = arith.mulf %1, %7 : vector<8x128xf32>
    %9 = vector.broadcast %5 : f32 to vector<8x128xf32>
    %10 = arith.mulf %3, %9 : vector<8x128xf32>
    %11 = arith.addf %8, %10 : vector<8x128xf32>
    %12 = vector.broadcast %6 : f32 to vector<8x128xf32>
    %13 = arith.addf %11, %12 : vector<8x128xf32>
    %c0_7 = arith.constant 0 : index
    %c0_8 = arith.constant 0 : index
    %14 = vector.load %arg4[%c0_7, %c0_8] : memref<8x128xf32, #tpu.memory_space<vmem>>, vector<8x128xf32>
    tpu.vector_store %arg4[%c0_7, %c0_8], %13 {strides = array<i32>} : memref<8x128xf32, #tpu.memory_space<vmem>>, vector<8x128xf32>,
    return
  }
  func.func @transform_0(%arg0: i32) -> (i32, i32, i32) {
    %c0_i32 = arith.constant 0 : i32
    %c0_i32_0 = arith.constant 0 : i32
    %c0_i32_1 = arith.constant 0 : i32
    return %c0_i32, %arg0, %c0_i32_0 : i32, i32, i32
  }
  func.func @transform_1(%arg0: i32) -> i32 {
    %c0_i32 = arith.constant 0 : i32
    %c0_i32_0 = arith.constant 0 : i32
    return %c0_i32 : i32
  }
  func.func @transform_2(%arg0: i32) -> i32 {
    %c0_i32 = arith.constant 0 : i32
    %c0_i32_0 = arith.constant 0 : i32
    return %c0_i32 : i32
  }
  func.func @transform_3(%arg0: i32) -> (i32, i32) {
    %c0_i32 = arith.constant 0 : i32
    %c0_i32_0 = arith.constant 0 : i32
    return %arg0, %c0_i32 : i32, i32
  }
}

</mosaic_0001>

<llo_original>
// kernel: tpu_custom_call.1
$region0: #{tpu_custom_call.1}
  #allocation0 [shape = 'u32[]', space=smem, size = 0x4, offset = 0x4, fixed_abs, tag = 'smem constant byte address 0x4 - core index']
  #allocation1 [shape = 'u32[144,128]{1,0:T(1,128)}', space=vmem, size = 0x12000, scoped, tag = 'internal scratch']
  #allocation2 [shape = 'f32[1]{0:T(128)S(6)}', space=smem, size = 0x200, scoped, tag = 'scoped memory for tpu_custom_call.1']
  %s0 = inlined_call_operand.hbm [shape: f32[2,8,128], index: 0, kind: input, shape index: {}]
  %s1 = inlined_call_operand.vmem [shape: f32[2], index: 1, kind: input, shape index: {}]
  %s2 = inlined_call_operand.<no memory space> [shape: f32[1], index: 2, kind: input, shape index: {}]
  %s3 = inlined_call_operand.hbm [shape: f32[8,128], index: 3, kind: output, shape index: {}]
  %s4 = sld [smem:[#allocation0]]
  $region30: #{tpu_custom_call.1} parent=0
    _
  %s6 = ssub.s32 1, %s4
  %s7 = scalar_select 0, %s6, %s4
  %8 = sst [smem:[#allocation2]] %s2
  $region1: #{tpu_custom_call.1} parent=0
    #allocation3 [shape = 'u8[8192]{0}', space=vmem, size = 0x2000, scoped, tag = 'input window, operand 0, single buffered']
    #allocation4 [shape = 's32[1]{0}', space=sflag, size = 0x4, scoped, tag = 'scoped memory for tpu_custom_call.1']
    #allocation5 [shape = 's32[1]{0}', space=sflag, size = 0x4, scoped, tag = 'scoped memory for tpu_custom_call.1']
    #allocation6 [shape = 's32[1]{0}', space=sflag, size = 0x4, scoped, tag = 'scoped memory for tpu_custom_call.1']
    #allocation7 [shape = 'u8[512]{0}', space=smem, size = 0x200, scoped, tag = 'input window, operand 1, single buffered']
    #allocation8 [shape = 'u8[4096]{0}', space=vmem, size = 0x1000, scoped, tag = 'output window, operand 0, single buffered']
    %9 = vsyncpa [#allocation4], 0
    %10 = vsyncpa [#allocation6], 0
    %11 = vsyncpa [#allocation5], 0
    // Predicated region
    $region2: #{tpu_custom_call.1} parent=1 // pred_check
      _
    $region3: #{tpu_custom_call.1} parent=1 // pred_check_branch
      %13 = sbr.rel (0) target = $region5
    $region4: #{tpu_custom_call.1} parent=1 // pred_region
      %s15 = ssub.s32 256, 256
      %16 = vsyncadd [#allocation4], %s15
      %s17 = sshll.u32 [#allocation3], 4
      %s18 = int_to_ptr.vmem [resolvable:$true] %s17
      %23 = dma.hbm_to_vmem [thread:$0]  %s0, 256, %s18, [#allocation4], 128, 128, 8
    $region5: #{tpu_custom_call.1} parent=1 // pred_fallthru
      _
    // Predicated region
    $region6: #{tpu_custom_call.1} parent=1 // pred_check
      _
    $region7: #{tpu_custom_call.1} parent=1 // pred_check_branch
      %25 = sbr.rel (0) target = $region9
    $region8: #{tpu_custom_call.1} parent=1 // pred_region
      %s27 = ssub.s32 16, 16
      %28 = vsyncadd [#allocation6], %s27
      %s30 = sshll.u32 %s1, 4
      %s31 = int_to_ptr.vmem [resolvable:$true] %s30
      %33 = dma.vmem_to_smem %s31, 16, [#allocation7], [#allocation6]
    $region9: #{tpu_custom_call.1} parent=1 // pred_fallthru
      _
    // Predicated region
    $region10: #{tpu_custom_call.1} parent=1 // pred_check
      _
    $region11: #{tpu_custom_call.1} parent=1 // pred_check_branch
      %35 = sbr.rel (0) target = $region13
    $region12: #{tpu_custom_call.1} parent=1 // pred_region
      _
    $region13: #{tpu_custom_call.1} parent=1 // pred_fallthru
      _
    // Predicated region
    $region14: #{tpu_custom_call.1} parent=1 // pred_check
      _
    $region15: #{tpu_custom_call.1} parent=1 // pred_check_branch
      %37 = sbr.rel (0) target = $region17
    $region16: #{tpu_custom_call.1} parent=1 // pred_region
      %38 = dma.done [#allocation4], 256
    $region17: #{tpu_custom_call.1} parent=1 // pred_fallthru
      _
    // Predicated region
    $region18: #{tpu_custom_call.1} parent=1 // pred_check
      _
    $region19: #{tpu_custom_call.1} parent=1 // pred_check_branch
      %40 = sbr.rel (0) target = $region21
    $region20: #{tpu_custom_call.1} parent=1 // pred_region
      %41 = dma.done [#allocation6], 16
    $region21: #{tpu_custom_call.1} parent=1 // pred_fallthru
      _
    %42 = sfence
    %v43 = vld [vmem:[#allocation3] sm:$0xff]
    %s44 = scalar_lea.vmem [#allocation3], 8
    %v45 = vld [vmem:[%s44] sm:$0xff]
    %s46 = sld [smem:[#allocation7]]
    %s47 = sld [smem:[#allocation7 + $0x1]]
    %s48 = sld [smem:[#allocation2]]
    %v49 = vstv %s46
    %v50 = vmul.f32 %v43, %v49
    %v51 = vstv %s47
    %v52 = vmul.f32 %v45, %v51
    %v53 = vadd.f32 %v50, %v52
    %v54 = vstv %s48
    %v55 = vadd.f32 %v53, %v54
    %56 = vst [vmem:[#allocation8] sm:$0xff] %v55
    // Predicated region
    $region22: #{tpu_custom_call.1} parent=1 // pred_check
      _
    $region23: #{tpu_custom_call.1} parent=1 // pred_check_branch
      %58 = sbr.rel (0) target = $region25
    $region24: #{tpu_custom_call.1} parent=1 // pred_region
      %s60 = ssub.s32 128, 128
      %61 = vsyncadd [#allocation5], %s60
      %s63 = sshll.u32 [#allocation8], 4
      %s64 = int_to_ptr.vmem [resolvable:$true] %s63
      %66 = dma.vmem_to_hbm [thread:$0]  %s64, 128, %s3, [#allocation5]
    $region25: #{tpu_custom_call.1} parent=1 // pred_fallthru
      _
    // Predicated region
    $region26: #{tpu_custom_call.1} parent=1 // pred_check
      _
    $region27: #{tpu_custom_call.1} parent=1 // pred_check_branch
      %68 = sbr.rel (0) target = $region29
    $region28: #{tpu_custom_call.1} parent=1 // pred_region
      %69 = dma.done [#allocation5], 128
    $region29: #{tpu_custom_call.1} parent=1 // pred_fallthru
      _
    %70 = vsyncpa [#allocation4], 1
    %71 = vsyncpa [#allocation5], 1
    %72 = vsyncpa [#allocation6], 1

</llo_original>
